<compile_context>
chip_gen: v7x
topology: tpu7x:2x2x1
jax: 0.10.0
libtpu: 0.0.40
codegen_flags: <defaults>
</compile_context>

<pallas_src>
import functools

import jax
import jax.numpy as jnp
from jax.experimental import pallas as pl
from jax.experimental.pallas import tpu as pltpu


# Max lane (last-dim) extent of a block: bounds the statically unrolled strip
# loop at MAX_BLOCK_LANES // 128 = 32 element-wise folds per grid step.
MAX_BLOCK_LANES = 4096


def _round_down(x, m):
    return (x // m) * m


def _round_up(x, m):
    return ((x + m - 1) // m) * m


def _dtype_min(dtype):
    dtype = jnp.dtype(dtype)
    if jnp.issubdtype(dtype, jnp.floating):
        return float("-inf")
    return int(jnp.iinfo(dtype).min)


def _fold_strips(x_ref, n_strips):
    """Fold the first n_strips*128 columns of the current block into (TR, 128)
    partials using only element-wise VPU ops.  Returns (sum_f32, max_native)."""
    strip0 = x_ref[:, 0:128]
    sum_p = strip0.astype(jnp.float32)
    max_p = strip0                              # max stays in the input dtype
    for k in range(1, n_strips):
        strip = x_ref[:, k * 128:(k + 1) * 128]
        sum_p = sum_p + strip.astype(jnp.float32)
        max_p = jnp.maximum(max_p, strip)
    return sum_p, max_p


def _tail_reduce(x_ref, start, stop):
    """Reduce the ragged (<128 lane) column range [start, stop) of the block."""
    tail = x_ref[:, start:stop]
    t_sum = jnp.sum(tail.astype(jnp.float32), axis=-1, keepdims=True)
    t_max = jnp.max(tail, axis=-1, keepdims=True).astype(jnp.float32)
    return t_sum, t_max


def _write_out(out_ref, avg, mx):
    """Single fused store: col 0 = avg, col 1 = max (avg, mx are (TR, 1) f32)."""
    tr = out_ref.shape[0]
    col = jax.lax.broadcasted_iota(jnp.int32, (tr, 2), 1)
    out_ref[...] = jnp.where(col == 0, avg, mx).astype(out_ref.dtype)


def _pool_kernel_single(x_ref, out_ref, *, hw, min_val):
    """Whole H*W fits one block: grid = (row_tiles,)."""
    n_full = hw // 128
    rem = hw % 128
    if n_full:
        sum_p, max_p = _fold_strips(x_ref, n_full)
        row_sum = jnp.sum(sum_p, axis=-1, keepdims=True)
        row_max = jnp.max(max_p, axis=-1, keepdims=True).astype(jnp.float32)
    else:
        tr = x_ref.shape[0]
        row_sum = jnp.zeros((tr, 1), jnp.float32)
        row_max = jnp.full((tr, 1), min_val, jnp.float32)
    if rem:
        t_sum, t_max = _tail_reduce(x_ref, n_full * 128, hw)
        row_sum = row_sum + t_sum
        row_max = jnp.maximum(row_max, t_max)
    _write_out(out_ref, row_sum * (1.0 / hw), row_max)


def _pool_kernel_multi(x_ref, out_ref, sum_ref, max_ref, *, hw, thw, last_valid,
                       min_val):
    """H*W spans several blocks: grid = (row_tiles, hw_tiles); axis 1 is the
    (last) reduction axis with persistent (TR, 128) scratch accumulators."""
    j = pl.program_id(1)
    n_j = pl.num_programs(1)
    n_strips = thw // 128                 # thw is a multiple of 128 here
    n_full_last = last_valid // 128       # static
    rem_last = last_valid % 128           # static

    @pl.when(j == 0)
    def _init():
        sum_ref[...] = jnp.zeros_like(sum_ref)
        max_ref[...] = jnp.full_like(max_ref, min_val)

    def _accumulate(strips):
        sum_p, max_p = _fold_strips(x_ref, strips)
        sum_ref[...] += sum_p
        max_ref[...] = jnp.maximum(max_ref[...], max_p)

    if last_valid == thw:                 # H*W tiles evenly: no ragged tile
        _accumulate(n_strips)
    else:
        @pl.when(j < n_j - 1)
        def _full_tiles():
            _accumulate(n_strips)

        if n_full_last:
            @pl.when(j == n_j - 1)
            def _ragged_tile():
                _accumulate(n_full_last)

    @pl.when(j == n_j - 1)
    def _finalize():
        row_sum = jnp.sum(sum_ref[...], axis=-1, keepdims=True)
        row_max = jnp.max(max_ref[...], axis=-1, keepdims=True).astype(jnp.float32)
        if rem_last:                      # ragged tail of the last spatial tile
            t_sum, t_max = _tail_reduce(x_ref, n_full_last * 128, last_valid)
            row_sum = row_sum + t_sum
            row_max = jnp.maximum(row_max, t_max)
        _write_out(out_ref, row_sum * (1.0 / hw), row_max)


def _default_budget():
    """(tile_bytes, vmem_limit_bytes): generation-aware with a safe fallback."""
    try:
        vmem_cap = int(pltpu.get_tpu_info().vmem_capacity_bytes)
    except Exception:
        vmem_cap = 0
    if vmem_cap >= 100 * 1024 * 1024:           # v5e / v6e: 128 MiB physical VMEM
        return 16 * 1024 * 1024, 64 * 1024 * 1024
    return 8 * 1024 * 1024, 48 * 1024 * 1024    # v7x (64 MiB / TC) or unknown


def _pool_tiling(nc, hw, itemsize, tile_bytes):
    """Pick (TR, THW, n_hw_tiles) for ~tile_bytes input blocks."""
    sublane = max(8, 32 // itemsize)            # 8 f32 / 16 bf16 / 32 int8-fp8
    # Spatial (lane) extent per block.
    if hw <= MAX_BLOCK_LANES and hw * sublane * itemsize <= tile_bytes:
        thw = hw                                # whole spatial extent in one block
    else:
        thw = min(MAX_BLOCK_LANES,
                  max(128, _round_down(tile_bytes // (sublane * itemsize), 128)))
        thw = min(thw, hw)
    n_j = pl.cdiv(hw, thw)

    # Row extent per block: the budget covers the input block plus the (TR,128)
    # partial accumulators (f32 sum + native max), so double-buffered blocks
    # plus temporaries stay within ~2x tile_bytes.
    temp_row = 128 * (4 + itemsize) if thw >= 128 else 32
    row_cost = thw * itemsize + temp_row
    if nc <= sublane:
        tr = nc                                 # single tiny block (full row dim)
    else:
        tr_cap = max(sublane, _round_down(tile_bytes // row_cost, sublane))
        n_i = max(2, pl.cdiv(nc, tr_cap))       # >= 2 row tiles ...
        if n_i % 2:                             # ... and an even count so the
            n_i += 1                            # v7x megacore split is balanced
        tr = max(sublane, min(tr_cap, _round_up(pl.cdiv(nc, n_i), sublane)))
    return tr, thw, n_j


def adaptive_concat_pool2d(x, *, tile_bytes=None, vmem_limit_bytes=None):
    """x: (N, C, H, W) -> (N, 2*C, 1, 1), matching the PyTorch module."""
    N, C, H, W = x.shape
    NC, HW = N * C, H * W
    default_tile, default_vmem = _default_budget()
    tile_bytes = default_tile if tile_bytes is None else tile_bytes
    vmem_limit_bytes = default_vmem if vmem_limit_bytes is None else vmem_limit_bytes

    x2d = x.reshape(NC, HW)
    min_val = _dtype_min(x.dtype)
    tr, thw, n_j = _pool_tiling(NC, HW, x.dtype.itemsize, tile_bytes)
    n_i = pl.cdiv(NC, tr)

    if n_j == 1:
        kernel = functools.partial(_pool_kernel_single, hw=HW, min_val=min_val)
        grid = (n_i,)
        in_specs = [pl.BlockSpec((tr, thw), lambda i: (i, 0))]
        out_specs = pl.BlockSpec((tr, 2), lambda i: (i, 0))
        scratch_shapes = []
        dims = ("parallel",)
    else:
        last_valid = HW - (n_j - 1) * thw
        kernel = functools.partial(_pool_kernel_multi, hw=HW, thw=thw,
                                   last_valid=last_valid, min_val=min_val)
        grid = (n_i, n_j)
        in_specs = [pl.BlockSpec((tr, thw), lambda i, j: (i, j))]
        out_specs = pl.BlockSpec((tr, 2), lambda i, j: (i, 0))
        scratch_shapes = [pltpu.VMEM((tr, 128), jnp.float32),  # running sum
                          pltpu.VMEM((tr, 128), x.dtype)]      # running max
        dims = ("parallel", "arbitrary")

    out2 = pl.pallas_call(
        kernel,
        out_shape=jax.ShapeDtypeStruct((NC, 2), x.dtype),
        grid_spec=pltpu.PrefetchScalarGridSpec(
            num_scalar_prefetch=0,
            grid=grid,
            in_specs=in_specs,
            out_specs=out_specs,
            scratch_shapes=scratch_shapes,
        ),
        compiler_params=pltpu.CompilerParams(
            dimension_semantics=dims,
            vmem_limit_bytes=vmem_limit_bytes,
        ),
    )(x2d)

    # (NC, 2) -> (N, 2C, 1, 1): avg channels first, then max channels, matching
    # torch.cat([avg, max], dim=1).  Tiny-array glue in XLA.
    return out2.reshape(N, C, 2).transpose(0, 2, 1).reshape(N, 2 * C, 1, 1)


if __name__ == "__main__":
    def reference(x):
        xf = x.astype(jnp.float32)
        return jnp.concatenate(
            [jnp.mean(xf, axis=(2, 3), keepdims=True),
             jnp.max(xf, axis=(2, 3), keepdims=True)], axis=1)

    # 1) Nominal small shape: single-block fast path (grid = (1,)).
    x1 = jax.random.normal(jax.random.PRNGKey(0), (2, 4, 16, 16), dtype=jnp.float32)
    out1 = jax.block_until_ready(adaptive_concat_pool2d(x1))
    assert out1.shape == (2, 8, 1, 1), out1.shape
    assert jnp.allclose(out1.astype(jnp.float32), reference(x1), atol=1e-5, rtol=1e-5)

    # 2) Ragged rows + ragged spatial tail + tiny tile budget: exercises the
    #    multi-tile reduction path (scratch accumulators, pl.when init/finalize),
    #    the ragged tail reduce, and the out-of-bounds row tail.
    x2 = jax.random.normal(jax.random.PRNGKey(1), (2, 13, 20, 20), dtype=jnp.float32)
    out2 = jax.block_until_ready(adaptive_concat_pool2d(x2, tile_bytes=8 * 1024))
    assert out2.shape == (2, 26, 1, 1), out2.shape
    assert jnp.allclose(out2.astype(jnp.float32), reference(x2), atol=1e-5, rtol=1e-5)

    # 3) bf16 input with H*W < 128: native-dtype max path + tail-only reduce.
    x3 = jax.random.normal(jax.random.PRNGKey(2), (1, 5, 9, 11), dtype=jnp.bfloat16)
    out3 = jax.block_until_ready(adaptive_concat_pool2d(x3))
    assert out3.shape == (1, 10, 1, 1), out3.shape
    assert jnp.allclose(out3.astype(jnp.float32), reference(x3), atol=2e-2, rtol=2e-2)

    print("KERNEL_OK")
</pallas_src>

<mosaic_0001>
module attributes {stable_mosaic.version = 11 : i64} {
  func.func @_pool_kernel_single(%arg0: i32, %arg1: memref<8x256xf32, #tpu.memory_space<vmem>>, %arg2: memref<8x2xf32, #tpu.memory_space<vmem>>) attributes {dimension_semantics = [#tpu.dimension_semantics<parallel>], iteration_bounds = array<i64: 1>, scalar_prefetch = 0 : i64, scratch_operands = 0 : i64, tpu.core_type = #tpu.core_type<tc>, window_params = [{transform_indices = @transform_0, window_bounds = array<i64: 8, 256>}, {transform_indices = @transform_1, window_bounds = array<i64: 8, 2>}]} {
    %c0 = arith.constant 0 : index
    %c0_0 = arith.constant 0 : index
    %0 = vector.load %arg1[%c0, %c0_0] : memref<8x256xf32, #tpu.memory_space<vmem>>, vector<8x128xf32>
    %c0_1 = arith.constant 0 : index
    %c128 = arith.constant 128 : index
    %1 = vector.load %arg1[%c0_1, %c128] : memref<8x256xf32, #tpu.memory_space<vmem>>, vector<8x128xf32>
    %2 = arith.addf %0, %1 : vector<8x128xf32>
    %3 = arith.maximumf %0, %1 : vector<8x128xf32>
    %cst = arith.constant dense<0.000000e+00> : vector<8xf32>
    %4 = vector.multi_reduction <add>, %2, %cst [1] : vector<8x128xf32> to vector<8xf32>
    %5 = vector.shape_cast %4 : vector<8xf32> to vector<8x1xf32>
    %cst_2 = arith.constant dense<0xFF800000> : vector<8xf32>
    %6 = vector.multi_reduction <maximumf>, %3, %cst_2 [1] : vector<8x128xf32> to vector<8xf32>
    %7 = vector.shape_cast %6 : vector<8xf32> to vector<8x1xf32>
    %cst_3 = arith.constant 3.906250e-03 : f32
    %8 = vector.broadcast %cst_3 : f32 to vector<8x1xf32>
    %9 = arith.mulf %5, %8 : vector<8x1xf32>
    %10 = tpu.iota {dimensions = array<i32: 1>} : vector<8x2xi32>
    %c0_i32 = arith.constant 0 : i32
    %11 = vector.broadcast %c0_i32 : i32 to vector<8x2xi32>
    %12 = arith.cmpi eq, %10, %11 : vector<8x2xi32>
    %13 = vector.shape_cast %9 : vector<8x1xf32> to vector<8x1xf32>
    %14 = vector.broadcast %13 : vector<8x1xf32> to vector<8x2xf32>
    %15 = vector.shape_cast %7 : vector<8x1xf32> to vector<8x1xf32>
    %16 = vector.broadcast %15 : vector<8x1xf32> to vector<8x2xf32>
    %17 = arith.select %12, %14, %16 : vector<8x2xi1>, vector<8x2xf32>
    %c0_4 = arith.constant 0 : index
    %c0_5 = arith.constant 0 : index
    %18 = vector.load %arg2[%c0_4, %c0_5] : memref<8x2xf32, #tpu.memory_space<vmem>>, vector<8x2xf32>
    tpu.vector_store %arg2[%c0_4, %c0_5], %17 {strides = array<i32>} : memref<8x2xf32, #tpu.memory_space<vmem>>, vector<8x2xf32>,
    return
  }
  func.func @transform_0(%arg0: i32) -> (i32, i32) {
    %c0_i32 = arith.constant 0 : i32
    %c0_i32_0 = arith.constant 0 : i32
    return %arg0, %c0_i32 : i32, i32
  }
  func.func @transform_1(%arg0: i32) -> (i32, i32) {
    %c0_i32 = arith.constant 0 : i32
    %c0_i32_0 = arith.constant 0 : i32
    return %arg0, %c0_i32 : i32, i32
  }
}

</mosaic_0001>

<llo_original>
// kernel: tpu_custom_call.1
$region0: #{tpu_custom_call.1}
  #allocation0 [shape = 'u32[]', space=smem, size = 0x4, offset = 0x4, fixed_abs, tag = 'smem constant byte address 0x4 - core index']
  #allocation1 [shape = 'u32[144,128]{1,0:T(1,128)}', space=vmem, size = 0x12000, scoped, tag = 'internal scratch']
  %s0 = inlined_call_operand.hbm [shape: f32[8,256], index: 0, kind: input, shape index: {}]
  %s1 = inlined_call_operand.vmem [shape: f32[8,2], index: 1, kind: output, shape index: {}]
  %s2 = sld [smem:[#allocation0]]
  $region18: #{tpu_custom_call.1} parent=0
    _
  %s4 = ssub.s32 1, %s2
  %s5 = scalar_select 0, %s4, %s2
  $region1: #{tpu_custom_call.1} parent=0
    #allocation2 [shape = 'u8[8192]{0}', space=vmem, size = 0x2000, scoped, tag = 'input window, operand 0, single buffered']
    #allocation3 [shape = 's32[1]{0}', space=sflag, size = 0x4, scoped, tag = 'scoped memory for tpu_custom_call.1']
    %6 = vsyncpa [#allocation3], 0
    // Predicated region
    $region2: #{tpu_custom_call.1} parent=1 // pred_check
      _
    $region3: #{tpu_custom_call.1} parent=1 // pred_check_branch
      %8 = sbr.rel (0) target = $region5
    $region4: #{tpu_custom_call.1} parent=1 // pred_region
      %s10 = ssub.s32 256, 256
      %11 = vsyncadd [#allocation3], %s10
      %s13 = sshll.u32 [#allocation2], 4
      %s14 = int_to_ptr.vmem [resolvable:$true] %s13
      %16 = dma.hbm_to_vmem [thread:$0]  %s0, 256, %s14, [#allocation3]
    $region5: #{tpu_custom_call.1} parent=1 // pred_fallthru
      _
    // Predicated region
    $region6: #{tpu_custom_call.1} parent=1 // pred_check
      _
    $region7: #{tpu_custom_call.1} parent=1 // pred_check_branch
      %18 = sbr.rel (0) target = $region9
    $region8: #{tpu_custom_call.1} parent=1 // pred_region
      %19 = dma.done [#allocation3], 256
    $region9: #{tpu_custom_call.1} parent=1 // pred_fallthru
      _
    %v20 = vld [vmem:[#allocation2] sm:$0xff]
    %v21 = vld [vmem:[#allocation2 + $0x8] sm:$0xff]
    %v22 = vadd.f32 %v20, %v21
    %v23 = vmax.f32 %v20, %v21
    %24 = vadd.xlane.f32.xlu0 %v22
    %v25 = vpop.xlane.xlu0 %24
    %26 = vmax.xlane.f32.xlu0 %v23
    %v27 = vpop.xlane.xlu0 %26
    %v28 = vmul.f32 %v25, 0.00390625
    %v29 = vlaneseq
    %v30 = vand.u32 %v29, 127
    %vm31 = vcmp.eq.s32.totalorder %v30, 0
    %v32 = vsel %vm31, %v28, %v27
    %vm33 = vcmask 15360
    %34 = vst.msk [vmem:[%s1] sm:$0xff] %vm33, %v32
    // Predicated region
    $region10: #{tpu_custom_call.1} parent=1 // pred_check
      _
    $region11: #{tpu_custom_call.1} parent=1 // pred_check_branch
      %36 = sbr.rel (0) target = $region13
    $region12: #{tpu_custom_call.1} parent=1 // pred_region
      _
    $region13: #{tpu_custom_call.1} parent=1 // pred_fallthru
      _
    // Predicated region
    $region14: #{tpu_custom_call.1} parent=1 // pred_check
      _
    $region15: #{tpu_custom_call.1} parent=1 // pred_check_branch
      %38 = sbr.rel (0) target = $region17
    $region16: #{tpu_custom_call.1} parent=1 // pred_region
      _
    $region17: #{tpu_custom_call.1} parent=1 // pred_fallthru
      _
    %39 = vsyncpa [#allocation3], 1

</llo_original>
